<compile_context>
chip_gen: v7x
topology: tpu7x:2x2x1
jax: 0.10.0
libtpu: 0.0.40
codegen_flags: <defaults>
</compile_context>

<pallas_src>
import functools
import math

import jax
import jax.numpy as jnp
from jax import lax
from jax.experimental import pallas as pl
from jax.experimental.pallas import tpu as pltpu


def _generation_params():
    """Return (target_tm, vmem_budget_bytes, vmem_limit_cap_bytes)."""
    vmem = 64 * 1024 * 1024  # conservative default: v7x per-TensorCore VMEM
    try:
        info = pltpu.get_tpu_info()
        cap = getattr(info, "vmem_capacity_bytes", None)
        if cap:
            vmem = int(cap)
    except Exception:
        pass
    if vmem >= 100 * 1024 * 1024:          # v5e / v6e: 128 MiB VMEM
        return 1024, 96 * 1024 * 1024, 100 * 1024 * 1024
    # v7x (64 MiB per TC) or unknown generation: leave headroom for Mosaic
    # internal scratch — never request physical capacity.
    return 512, 40 * 1024 * 1024, 56 * 1024 * 1024


def _vmem_bytes(tm, H, E, K, dtype, w_buffers):
    """Rough per-grid-step VMEM footprint (pipeline buffers + temporaries)."""
    item = jnp.dtype(dtype).itemsize
    x_bytes = 2 * tm * H * item                        # token tile, double-buffered
    w_bytes = w_buffers * H * E * item                 # gating weight (constant block)
    out_bytes = 2 * 2 * K * max(tm, 128) * 4           # (K, tm) idx + weight blocks
    # logits, work, iota, is_max, masked-iota, exp terms, transposes... ~8 lane-padded temps
    work_bytes = 8 * tm * max(E, 128) * 4
    return x_bytes + w_bytes + out_bytes + work_bytes


def _moe_gate_kernel(x_ref, wt_ref, idx_ref, wgt_ref, *, top_k, norm_topk_prob):
    # x_ref: (tm, H) token tile; wt_ref: (H, E) pre-transposed gating weight.
    x = x_ref[...]
    wt = wt_ref[...]

    # logits = x @ W.T, canonical (m,k)x(k,n) MXU matmul with f32 accumulation.
    logits = jnp.dot(x, wt, preferred_element_type=jnp.float32)   # (tm, E) f32

    tm, num_experts = logits.shape
    expert_iota = lax.broadcasted_iota(jnp.int32, (tm, num_experts), 1)

    # Iterative top-k on the raw logits (softmax is strictly monotone per row,
    # so selection and order match top-k on the softmax). Ties break to the
    # lowest expert index (matches torch.topk / lax.top_k).
    work = logits
    vals = []
    idxs = []
    for k in range(top_k):
        m = jnp.max(work, axis=-1, keepdims=True)                    # (tm, 1)
        is_max = work == m
        idx = jnp.min(jnp.where(is_max, expert_iota, num_experts),
                      axis=-1, keepdims=True)                        # (tm, 1) int32
        vals.append(m)
        idxs.append(idx)
        if k + 1 < top_k:
            work = jnp.where(expert_iota == idx, -jnp.inf, work)

    topk_logits = vals[0] if top_k == 1 else jnp.concatenate(vals, axis=-1)  # (tm, K)
    topk_idx = idxs[0] if top_k == 1 else jnp.concatenate(idxs, axis=-1)     # (tm, K)

    # Softmax evaluated only for the K winners. The top-1 logit IS the row max.
    row_max = vals[0]                                     # (tm, 1)
    exp_topk = jnp.exp(topk_logits - row_max)             # (tm, K); column 0 == 1

    if top_k > 1 and norm_topk_prob:
        # The global softmax denominator cancels under renormalization, so skip
        # it entirely: p_i = e_i / (sum_topk e_j + eps). Exact division keeps
        # the result within 1e-5 of the reference.
        denom = jnp.sum(exp_topk, axis=-1, keepdims=True) + 1e-20    # (tm, 1)
    else:
        # Need the true softmax probabilities: full-row denominator.
        denom = jnp.sum(jnp.exp(logits - row_max), axis=-1, keepdims=True)
    topk_w = exp_topk / denom                                        # (tm, K)

    # Lane-dense stores: (K, tm) blocks — tokens on lanes, full unmasked vregs
    # and a contiguous writeback DMA (the wrapper transposes back to (T, K)).
    idx_ref[...] = jnp.transpose(topk_idx).astype(jnp.int32)
    wgt_ref[...] = jnp.transpose(topk_w).astype(wgt_ref.dtype)


def moe_gate_forward(hidden_states, weight, *, top_k, norm_topk_prob=True, tm=None):
    """Pallas MoEGate forward. Returns (topk_idx, topk_weight, aux_loss)."""
    B, S, H = hidden_states.shape
    E, Hw = weight.shape
    assert H == Hw, "gating weight must be (n_routed_experts, dim)"
    x = hidden_states.reshape(-1, H)
    T = x.shape[0]

    # Cast + pre-transpose the weight once in the wrapper: the kernel consumes
    # a canonical (H, E) RHS in the activation dtype. (In a real model, store
    # the gate weight as (H, E) so this transpose is free.)
    wt = jnp.asarray(weight, dtype=x.dtype).T                       # (H, E)

    target_tm, vmem_budget, vmem_cap = _generation_params()

    # Single-buffer the grid-constant weight block only when a second
    # (double-buffer) copy would meaningfully pressure VMEM.
    w_bytes = E * H * jnp.dtype(x.dtype).itemsize
    single_buffer_w = w_bytes > (512 * 1024)
    w_buffers = 1 if single_buffer_w else 2

    # ---- token-tile selection -------------------------------------------
    if tm is None:
        tm = target_tm
        while tm > 128 and _vmem_bytes(tm, H, E, top_k, x.dtype, w_buffers) > vmem_budget:
            tm //= 2
        if T > 128:
            # Keep >= 2 grid steps (pipelining + v7x megacore sharding) ...
            while tm > 128 and pl.cdiv(T, tm) < 2:
                tm //= 2
            # ... and bias toward an even tile count so both v7x TCs get work.
            nblk = pl.cdiv(T, tm)
            if nblk > 1 and nblk % 2 == 1 and tm > 128 and pl.cdiv(T, tm // 2) % 2 == 0:
                tm //= 2
    else:
        tm = max(128, (int(tm) // 128) * 128)   # keep tm lane/sublane aligned
    if tm >= T:
        tm = T   # single full-extent block: no alignment constraint applies

    # Non-divisible grid: last block is partial; Pallas pads boundary reads and
    # masks boundary writes, so no wrapper-side padding copy of x is needed.
    grid = (pl.cdiv(T, tm),)

    needed = _vmem_bytes(tm, H, E, top_k, x.dtype, w_buffers)
    vmem_limit = int(min(max(needed * 1.25 + (4 << 20), 16 << 20), vmem_cap))

    kernel = functools.partial(
        _moe_gate_kernel, top_k=top_k, norm_topk_prob=norm_topk_prob)

    cost = pl.CostEstimate(
        flops=int(2 * T * H * E),
        transcendentals=int(T * (top_k if (top_k > 1 and norm_topk_prob) else E)),
        bytes_accessed=int(T * H * jnp.dtype(x.dtype).itemsize
                           + E * H * jnp.dtype(x.dtype).itemsize
                           + 2 * T * top_k * 4),
    )

    if single_buffer_w:
        w_spec = pl.BlockSpec((H, E), lambda i: (0, 0), pipeline_mode=pl.Buffered(1))
    else:
        w_spec = pl.BlockSpec((H, E), lambda i: (0, 0))

    idx_t, wgt_t = pl.pallas_call(
        kernel,
        out_shape=(
            jax.ShapeDtypeStruct((top_k, T), jnp.int32),
            jax.ShapeDtypeStruct((top_k, T), jnp.float32),
        ),
        grid_spec=pltpu.PrefetchScalarGridSpec(
            num_scalar_prefetch=0,
            grid=grid,
            in_specs=[
                pl.BlockSpec((tm, H), lambda i: (i, 0)),   # token tile (streams)
                w_spec,                                    # gating weight (constant)
            ],
            out_specs=[
                pl.BlockSpec((top_k, tm), lambda i: (0, i)),
                pl.BlockSpec((top_k, tm), lambda i: (0, i)),
            ],
        ),
        compiler_params=pltpu.CompilerParams(
            dimension_semantics=("parallel",),
            vmem_limit_bytes=vmem_limit,
        ),
        cost_estimate=cost,
    )(x, wt)

    # Tiny (K, T) -> (T, K) transposes in the wrapper (negligible).
    topk_idx = idx_t.T
    topk_weight = wgt_t.T

    aux_loss = 0.0  # eval-mode forward (self.training == False)
    return topk_idx, topk_weight, aux_loss


def _kaiming_uniform(key, n_experts, gating_dim):
    # torch.nn.init.kaiming_uniform_(w, a=sqrt(5)) for an (E, H) matrix:
    # fan_in = H, gain = sqrt(2/(1+a^2)) = sqrt(1/3), bound = gain*sqrt(3/fan_in)
    bound = math.sqrt(1.0 / 3.0) * math.sqrt(3.0 / gating_dim)
    return jax.random.uniform(
        key, (n_experts, gating_dim), jnp.float32, minval=-bound, maxval=bound)


def _reference(hidden_states, weight, top_k, norm_topk_prob):
    B, S, H = hidden_states.shape
    x = hidden_states.reshape(-1, H).astype(jnp.float32)
    logits = x @ weight.astype(jnp.float32).T
    scores = jax.nn.softmax(logits, axis=-1)
    vals, idx = lax.top_k(scores, top_k)   # sorted descending, same as kernel
    if top_k > 1 and norm_topk_prob:
        vals = vals / (jnp.sum(vals, axis=-1, keepdims=True) + 1e-20)
    return idx.astype(jnp.int32), vals


def _check(name, hidden_states, weight, top_k, norm_topk_prob):
    topk_idx, topk_w, aux = moe_gate_forward(
        hidden_states, weight, top_k=top_k, norm_topk_prob=norm_topk_prob)
    jax.block_until_ready((topk_idx, topk_w))
    ref_idx, ref_w = _reference(hidden_states, weight, top_k, norm_topk_prob)
    T = hidden_states.shape[0] * hidden_states.shape[1]
    assert topk_idx.shape == (T, top_k) and topk_w.shape == (T, top_k), name
    assert jnp.array_equal(topk_idx, ref_idx), f"top-k indices mismatch ({name})"
    assert jnp.allclose(topk_w, ref_w, atol=1e-5, rtol=1e-5), \
        f"top-k weights mismatch ({name})"
    assert aux == 0.0
    return topk_idx, topk_w


if __name__ == "__main__":
    key = jax.random.PRNGKey(0)
    k1, k2, k3, k4, k5, k6 = jax.random.split(key, 6)

    # Case 1: small config consistent with the module (B, S, dim / E, K).
    hs1 = jax.random.normal(k1, (2, 8, 32), dtype=jnp.float32)      # T = 16
    w1 = _kaiming_uniform(k2, 8, 32)                                # E=8
    _check("case1", hs1, w1, top_k=2, norm_topk_prob=True)

    # Case 2: T not sublane-aligned (single full-extent block).
    hs2 = jax.random.normal(k3, (3, 7, 64), dtype=jnp.float32)      # T = 21
    w2 = _kaiming_uniform(k4, 16, 64)                               # E=16
    _check("case2", hs2, w2, top_k=4, norm_topk_prob=True)

    # Case 3: multi-tile grid with a partial (masked) boundary block.
    hs3 = jax.random.normal(k5, (2, 70, 32), dtype=jnp.float32)     # T = 140
    w3 = _kaiming_uniform(k6, 8, 32)                                # E=8
    _check("case3", hs3, w3, top_k=2, norm_topk_prob=True)

    print("KERNEL_OK")
</pallas_src>

<mosaic_0001>
module attributes {stable_mosaic.version = 11 : i64} {
  func.func @_moe_gate_kernel(%arg0: i32, %arg1: memref<16x32xf32, #tpu.memory_space<vmem>>, %arg2: memref<32x8xf32, #tpu.memory_space<vmem>>, %arg3: memref<2x16xi32, #tpu.memory_space<vmem>>, %arg4: memref<2x16xf32, #tpu.memory_space<vmem>>) attributes {dimension_semantics = [#tpu.dimension_semantics<parallel>], iteration_bounds = array<i64: 1>, scalar_prefetch = 0 : i64, scratch_operands = 0 : i64, tpu.core_type = #tpu.core_type<tc>, window_params = [{transform_indices = @transform_0, window_bounds = array<i64: 16, 32>}, {pipeline_mode = #tpu.pipeline_mode<synchronous>, transform_indices = @transform_1, window_bounds = array<i64: 32, 8>}, {transform_indices = @transform_2, window_bounds = array<i64: 2, 16>}, {transform_indices = @transform_3, window_bounds = array<i64: 2, 16>}]} {
    %c0 = arith.constant 0 : index
    %c0_0 = arith.constant 0 : index
    %0 = vector.load %arg1[%c0, %c0_0] : memref<16x32xf32, #tpu.memory_space<vmem>>, vector<16x32xf32>
    %c0_1 = arith.constant 0 : index
    %c0_2 = arith.constant 0 : index
    %1 = vector.load %arg2[%c0_1, %c0_2] : memref<32x8xf32, #tpu.memory_space<vmem>>, vector<32x8xf32>
    %cst = arith.constant dense<0.000000e+00> : vector<16x8xf32>
    %2 = tpu.matmul %0, %1, %cst {dimension_numbers = #tpu.dot_dimension_numbers<[1], [0], [0], [1], [0, 0, 1, 1], [], []>} : vector<16x32xf32>, vector<32x8xf32>, vector<16x8xf32> -> vector<16x8xf32>
    %3 = tpu.iota {dimensions = array<i32: 1>} : vector<16x8xi32>
    %cst_3 = arith.constant dense<0xFF800000> : vector<16xf32>
    %4 = vector.multi_reduction <maximumf>, %2, %cst_3 [1] : vector<16x8xf32> to vector<16xf32>
    %5 = vector.shape_cast %4 : vector<16xf32> to vector<16x1xf32>
    %6 = vector.broadcast %5 : vector<16x1xf32> to vector<16x8xf32>
    %7 = arith.cmpf oeq, %2, %6 : vector<16x8xf32>
    %c8_i32 = arith.constant 8 : i32
    %8 = vector.broadcast %c8_i32 : i32 to vector<16x8xi32>
    %9 = arith.select %7, %3, %8 : vector<16x8xi1>, vector<16x8xi32>
    %cst_4 = arith.constant dense<2147483647> : vector<16xi32>
    %10 = vector.multi_reduction <minsi>, %9, %cst_4 [1] : vector<16x8xi32> to vector<16xi32>
    %11 = vector.shape_cast %10 : vector<16xi32> to vector<16x1xi32>
    %12 = vector.broadcast %11 : vector<16x1xi32> to vector<16x8xi32>
    %13 = arith.cmpi eq, %3, %12 : vector<16x8xi32>
    %cst_5 = arith.constant 0xFF800000 : f32
    %14 = vector.broadcast %cst_5 : f32 to vector<16x8xf32>
    %15 = arith.select %13, %14, %2 : vector<16x8xi1>, vector<16x8xf32>
    %cst_6 = arith.constant dense<0xFF800000> : vector<16xf32>
    %16 = vector.multi_reduction <maximumf>, %15, %cst_6 [1] : vector<16x8xf32> to vector<16xf32>
    %17 = vector.shape_cast %16 : vector<16xf32> to vector<16x1xf32>
    %18 = vector.broadcast %17 : vector<16x1xf32> to vector<16x8xf32>
    %19 = arith.cmpf oeq, %15, %18 : vector<16x8xf32>
    %c8_i32_7 = arith.constant 8 : i32
    %20 = vector.broadcast %c8_i32_7 : i32 to vector<16x8xi32>
    %21 = arith.select %19, %3, %20 : vector<16x8xi1>, vector<16x8xi32>
    %cst_8 = arith.constant dense<2147483647> : vector<16xi32>
    %22 = vector.multi_reduction <minsi>, %21, %cst_8 [1] : vector<16x8xi32> to vector<16xi32>
    %23 = vector.shape_cast %22 : vector<16xi32> to vector<16x1xi32>
    %24 = tpu.concatenate %5, %17 in 1 : vector<16x1xf32>, vector<16x1xf32> -> vector<16x2xf32>
    %25 = tpu.concatenate %11, %23 in 1 : vector<16x1xi32>, vector<16x1xi32> -> vector<16x2xi32>
    %26 = vector.broadcast %5 : vector<16x1xf32> to vector<16x2xf32>
    %27 = arith.subf %24, %26 : vector<16x2xf32>
    %28 = math.exp %27 : vector<16x2xf32>
    %cst_9 = arith.constant dense<0.000000e+00> : vector<16xf32>
    %29 = vector.multi_reduction <add>, %28, %cst_9 [1] : vector<16x2xf32> to vector<16xf32>
    %30 = vector.shape_cast %29 : vector<16xf32> to vector<16x1xf32>
    %cst_10 = arith.constant 9.99999968E-21 : f32
    %31 = vector.broadcast %cst_10 : f32 to vector<16x1xf32>
    %32 = arith.addf %30, %31 : vector<16x1xf32>
    %33 = vector.broadcast %32 : vector<16x1xf32> to vector<16x2xf32>
    %34 = arith.divf %28, %33 : vector<16x2xf32>
    %35 = tpu.transpose %25, [1, 0] : vector<16x2xi32> -> vector<2x16xi32>
    %c0_11 = arith.constant 0 : index
    %c0_12 = arith.constant 0 : index
    %36 = vector.load %arg3[%c0_11, %c0_12] : memref<2x16xi32, #tpu.memory_space<vmem>>, vector<2x16xi32>
    tpu.vector_store %arg3[%c0_11, %c0_12], %35 {strides = array<i32>} : memref<2x16xi32, #tpu.memory_space<vmem>>, vector<2x16xi32>,
    %37 = tpu.transpose %34, [1, 0] : vector<16x2xf32> -> vector<2x16xf32>
    %c0_13 = arith.constant 0 : index
    %c0_14 = arith.constant 0 : index
    %38 = vector.load %arg4[%c0_13, %c0_14] : memref<2x16xf32, #tpu.memory_space<vmem>>, vector<2x16xf32>
    tpu.vector_store %arg4[%c0_13, %c0_14], %37 {strides = array<i32>} : memref<2x16xf32, #tpu.memory_space<vmem>>, vector<2x16xf32>,
    return
  }
  func.func @transform_0(%arg0: i32) -> (i32, i32) {
    %c0_i32 = arith.constant 0 : i32
    %c0_i32_0 = arith.constant 0 : i32
    return %arg0, %c0_i32 : i32, i32
  }
  func.func @transform_1(%arg0: i32) -> (i32, i32) {
    %c0_i32 = arith.constant 0 : i32
    %c0_i32_0 = arith.constant 0 : i32
    %c0_i32_1 = arith.constant 0 : i32
    return %c0_i32, %c0_i32_0 : i32, i32
  }
  func.func @transform_2(%arg0: i32) -> (i32, i32) {
    %c0_i32 = arith.constant 0 : i32
    %c0_i32_0 = arith.constant 0 : i32
    return %c0_i32, %arg0 : i32, i32
  }
  func.func @transform_3(%arg0: i32) -> (i32, i32) {
    %c0_i32 = arith.constant 0 : i32
    %c0_i32_0 = arith.constant 0 : i32
    return %c0_i32, %arg0 : i32, i32
  }
}

</mosaic_0001>

<llo_original>
// kernel: tpu_custom_call.1
$region0: #{tpu_custom_call.1}
  #allocation0 [shape = 'u32[]', space=smem, size = 0x4, offset = 0x4, fixed_abs, tag = 'smem constant byte address 0x4 - core index']
  #allocation1 [shape = 'u32[144,128]{1,0:T(1,128)}', space=vmem, size = 0x12000, scoped, tag = 'internal scratch']
  %s0 = inlined_call_operand.vmem [shape: f32[16,32], index: 0, kind: input, shape index: {}]
  %s1 = inlined_call_operand.vmem [shape: f32[32,8], index: 1, kind: input, shape index: {}]
  %s2 = inlined_call_operand.hbm [shape: s32[2,16], index: 2, kind: output, shape index: {0}]
  %s3 = inlined_call_operand.hbm [shape: f32[2,16], index: 3, kind: output, shape index: {1}]
  %4 = xla_tuple %s2, %s3
  %s5 = sld [smem:[#allocation0]]
  $region26: #{tpu_custom_call.1} parent=0
    _
  %s7 = ssub.s32 1, %s5
  %s8 = scalar_select 0, %s7, %s5
  $region1: #{tpu_custom_call.1} parent=0
    #allocation2 [shape = 'u8[1024]{0}', space=vmem, size = 0x400, scoped, tag = 'output window, operand 0, single buffered']
    #allocation3 [shape = 's32[1]{0}', space=sflag, size = 0x4, scoped, tag = 'scoped memory for tpu_custom_call.1']
    #allocation4 [shape = 'u8[1024]{0}', space=vmem, size = 0x400, scoped, tag = 'output window, operand 1, single buffered']
    #allocation5 [shape = 's32[1]{0}', space=sflag, size = 0x4, scoped, tag = 'scoped memory for tpu_custom_call.1']
    %9 = vsyncpa [#allocation3], 0
    %10 = vsyncpa [#allocation5], 0
    // Predicated region
    $region2: #{tpu_custom_call.1} parent=1 // pred_check
      _
    $region3: #{tpu_custom_call.1} parent=1 // pred_check_branch
      %12 = sbr.rel (0) target = $region5
    $region4: #{tpu_custom_call.1} parent=1 // pred_region
      _
    $region5: #{tpu_custom_call.1} parent=1 // pred_fallthru
      _
    // Predicated region
    $region6: #{tpu_custom_call.1} parent=1 // pred_check
      _
    $region7: #{tpu_custom_call.1} parent=1 // pred_check_branch
      %14 = sbr.rel (0) target = $region9
    $region8: #{tpu_custom_call.1} parent=1 // pred_region
      _
    $region9: #{tpu_custom_call.1} parent=1 // pred_fallthru
      _
    %v15 = vld [vmem:[%s0] sm:$0xff]
    %v16 = vld [vmem:[%s0 + $0x8] sm:$0xff]
    %v17 = vld [vmem:[%s1] sm:$0xff]
    %v18 = vld [vmem:[%s1 + $0x8] sm:$0xff]
    %v19 = vld [vmem:[%s1 + $0x10] sm:$0xff]
    %v20 = vld [vmem:[%s1 + $0x18] sm:$0xff]
    %vm21 = vcmask 261120
    %v23 = vsel %vm21, %v15, 0
    %v26 = vsel %vm21, %v16, 0
    %28 = vmatprep.subr.mxu0 0.0
    %29 = vmatpush1.msra.mxu0 %v17
    %30 = vmatprep.subr.mxu0 0.0
    %31 = vmatpush1.msra.mxu0 %v18
    %32 = vmatprep.subr.mxu0 0.0
    %33 = vmatpush1.msra.mxu0 %v19
    %34 = vmatprep.subr.mxu0 0.0
    %35 = vmatpush1.msra.mxu0 %v20
    %36 = vmatprep.subr.mxu0 0.0
    %37 = vmatpush1.msra.mxu0 0.0
    %38 = vmatprep.subr.mxu0 0.0
    %39 = vmatpush1.msra.mxu0 0.0
    %40 = vmatprep.subr.mxu0 0.0
    %41 = vmatpush1.msra.mxu0 0.0
    %42 = vmatprep.subr.mxu0 0.0
    %43 = vmatpush1.msra.mxu0 0.0
    %44 = vmatprep.subr.mxu0 0.0
    %45 = vmatpush1.msra.mxu0 0.0
    %46 = vmatprep.subr.mxu0 0.0
    %47 = vmatpush1.msra.mxu0 0.0
    %48 = vmatprep.subr.mxu0 0.0
    %49 = vmatpush1.msra.mxu0 0.0
    %50 = vmatprep.subr.mxu0 0.0
    %51 = vmatpush1.msra.mxu0 0.0
    %52 = vmatprep.subr.mxu0 0.0
    %53 = vmatpush1.msra.mxu0 0.0
    %54 = vmatprep.subr.mxu0 0.0
    %55 = vmatpush1.msra.mxu0 0.0
    %56 = vmatprep.subr.mxu0 0.0
    %57 = vmatpush1.msra.mxu0 0.0
    %58 = vmatprep.subr.mxu0 0.0
    %59 = vmatpush1.msra.mxu0 0.0
    %60 = vmatprep.subr.mxu0 0.0
    %61 = vmatpush1.msra.mxu0 0.0
    %62 = vmatprep.subr.mxu0 0.0
    %63 = vmatpush1.msra.mxu0 0.0
    %64 = vmatprep.subr.mxu0 0.0
    %65 = vmatpush1.msra.mxu0 0.0
    %66 = vmatprep.subr.mxu0 0.0
    %67 = vmatpush1.msra.mxu0 0.0
    %68 = vmatprep.subr.mxu0 0.0
    %69 = vmatpush1.msra.mxu0 0.0
    %70 = vmatprep.subr.mxu0 0.0
    %71 = vmatpush1.msra.mxu0 0.0
    %72 = vmatprep.subr.mxu0 0.0
    %73 = vmatpush1.msra.mxu0 0.0
    %74 = vmatprep.subr.mxu0 0.0
    %75 = vmatpush1.msra.mxu0 0.0
    %76 = vmatprep.subr.mxu0 0.0
    %77 = vmatpush1.msra.mxu0 0.0
    %78 = vmatprep.subr.mxu0 0.0
    %79 = vmatpush1.msra.mxu0 0.0
    %80 = vmatprep.subr.mxu0 0.0
    %81 = vmatpush1.msra.mxu0 0.0
    %82 = vmatprep.subr.mxu0 0.0
    %83 = vmatpush1.msra.mxu0 0.0
    %84 = vmatprep.subr.mxu0 0.0
    %85 = vmatpush1.msra.mxu0 0.0
    %86 = vmatprep.subr.mxu0 0.0
    %87 = vmatpush1.msra.mxu0 0.0
    %88 = vmatprep.subr.mxu0 0.0
    %89 = vmatpush1.msra.mxu0 0.0
    %90 = vmatprep.subr.mxu0 0.0
    %91 = vmatpush1.msra.mxu0 0.0
    %92 = vmatprep.mubr.f32.mxu0 0.0
    %93 = vmatmul.mubr.f32.gmra.mrb[0].mxu0 %v23
    %v94 = vpop.f32.mrb[0].mxu0
    %v95 = vadd.f32 0.0, %v94
    %v96 = vpop.f32.mrb[0].mxu0
    %97 = vmatprep.mubr.f32.mxu0 0.0
    %98 = vmatmul.mubr.f32.gmra.mrb[0].mxu0 %v26
    %v99 = vpop.f32.mrb[0].mxu0
    %v100 = vadd.f32 0.0, %v99
    %v101 = vpop.f32.mrb[0].mxu0
    %102 = vdwg.mxu0
    %v103 = vlaneseq
    %v104 = vand.u32 %v103, 127
    %vm105 = vcmask 64512
    %v106 = vsel %vm105, %v95, -inf
    %107 = vmax.xlane.f32.xlu0 %v106
    %v108 = vpop.xlane.xlu0 %107
    %v109 = vsel %vm105, %v100, -inf
    %110 = vmax.xlane.f32.xlu0 %v109
    %v111 = vpop.xlane.xlu0 %110
    %vm112 = vcmp.eq.f32.partialorder %v95, %v108
    %vm113 = vcmp.eq.f32.partialorder %v100, %v111
    %v114 = vsel %vm112, %v104, 8
    %v115 = vsel %vm113, %v104, 8
    %v116 = vsel %vm105, %v114, 2147483647
    %v117 = vand.u32 %v116, 65535
    %v118 = vshra.s32 %v116, 16
    %v119 = vcvt.s32.f32 %v117
    %v120 = vcvt.s32.f32 %v118
    %121 = vmin.xlane.f32.xlu0 %v120
    %v122 = vpop.xlane.xlu0 %121
    %vm123 = vcmp.eq.f32.partialorder %v120, %v122
    %v124 = vsel %vm123, %v119, inf
    %125 = vmin.xlane.f32.xlu0 %v124
    %v126 = vpop.xlane.xlu0 %125
    %v127 = vcvt.f32.s32 %v126
    %v128 = vcvt.f32.s32 %v122
    %v129 = vshll.u32 %v128, 16
    %v130 = vadd.s32 %v129, %v127
    %v131 = vsel %vm105, %v115, 2147483647
    %v132 = vand.u32 %v131, 65535
    %v133 = vshra.s32 %v131, 16
    %v134 = vcvt.s32.f32 %v132
    %v135 = vcvt.s32.f32 %v133
    %136 = vmin.xlane.f32.xlu0 %v135
    %v137 = vpop.xlane.xlu0 %136
    %vm138 = vcmp.eq.f32.partialorder %v135, %v137
    %v139 = vsel %vm138, %v134, inf
    %140 = vmin.xlane.f32.xlu0 %v139
    %v141 = vpop.xlane.xlu0 %140
    %v142 = vcvt.f32.s32 %v141
    %v143 = vcvt.f32.s32 %v137
    %v144 = vshll.u32 %v143, 16
    %v145 = vadd.s32 %v144, %v142
    %vm146 = vcmp.eq.s32.totalorder %v104, %v130
    %vm147 = vcmp.eq.s32.totalorder %v104, %v145
    %v148 = vsel %vm146, -inf, %v95
    %v149 = vsel %vm147, -inf, %v100
    %v150 = vsel %vm105, %v148, -inf
    %151 = vmax.xlane.f32.xlu0 %v150
    %v152 = vpop.xlane.xlu0 %151
    %v153 = vsel %vm105, %v149, -inf
    %154 = vmax.xlane.f32.xlu0 %v153
    %v155 = vpop.xlane.xlu0 %154
    %vm156 = vcmp.eq.f32.partialorder %v148, %v152
    %vm157 = vcmp.eq.f32.partialorder %v149, %v155
    %v158 = vsel %vm156, %v104, 8
    %v159 = vsel %vm157, %v104, 8
    %v160 = vsel %vm105, %v158, 2147483647
    %v161 = vand.u32 %v160, 65535
    %v162 = vshra.s32 %v160, 16
    %v163 = vcvt.s32.f32 %v161
    %v164 = vcvt.s32.f32 %v162
    %165 = vmin.xlane.f32.xlu0 %v164
    %v166 = vpop.xlane.xlu0 %165
    %vm167 = vcmp.eq.f32.partialorder %v164, %v166
    %v168 = vsel %vm167, %v163, inf
    %169 = vmin.xlane.f32.xlu0 %v168
    %v170 = vpop.xlane.xlu0 %169
    %v171 = vcvt.f32.s32 %v170
    %v172 = vcvt.f32.s32 %v166
    %v173 = vshll.u32 %v172, 16
    %v174 = vadd.s32 %v173, %v171
    %v175 = vsel %vm105, %v159, 2147483647
    %v176 = vand.u32 %v175, 65535
    %v177 = vshra.s32 %v175, 16
    %v178 = vcvt.s32.f32 %v176
    %v179 = vcvt.s32.f32 %v177
    %180 = vmin.xlane.f32.xlu0 %v179
    %v181 = vpop.xlane.xlu0 %180
    %vm182 = vcmp.eq.f32.partialorder %v179, %v181
    %v183 = vsel %vm182, %v178, inf
    %184 = vmin.xlane.f32.xlu0 %v183
    %v185 = vpop.xlane.xlu0 %184
    %v186 = vcvt.f32.s32 %v185
    %v187 = vcvt.f32.s32 %v181
    %v188 = vshll.u32 %v187, 16
    %v189 = vadd.s32 %v188, %v186
    %vm190 = vcmask 7168
    %v191 = vsel %vm190, %v108, %v152
    %v192 = vsel %vm190, %v111, %v155
    %v193 = vsel %vm190, %v130, %v174
    %v194 = vsel %vm190, %v145, %v189
    %v195 = vsub.f32 %v191, %v108
    %v196 = vsub.f32 %v192, %v111
    %v197 = vmul.f32 %v195, 1.442695
    %v198 = vpow.pop %v197
    %v199 = vmul.f32 %v196, 1.442695
    %v200 = vpow.pop %v199
    %vm201 = vcmask 15360
    %v202 = vsel %vm201, %v198, 0.0
    %203 = vadd.xlane.f32.xlu0 %v202
    %v204 = vpop.xlane.xlu0 %203
    %v205 = vsel %vm201, %v200, 0.0
    %206 = vadd.xlane.f32.xlu0 %v205
    %v207 = vpop.xlane.xlu0 %206
    %v208 = vadd.f32 %v204, 1e-20
    %v209 = vadd.f32 %v207, 1e-20
    %v210 = vrcp.pop %v208
    %v211 = vmul.f32 %v198, %v210
    %v212 = vrcp.pop %v209
    %v213 = vmul.f32 %v200, %v212
    %214 = vxpose.xlu0.b32.start [1/16] %v193, 128
    %215 = vxpose.xlu0.b32.cont [2/16] %v194, 128
    %216 = vxpose.xlu0.b32.cont [3/16] 0, 128
    %217 = vxpose.xlu0.b32.cont [4/16] 0, 128
    %218 = vxpose.xlu0.b32.cont [5/16] 0, 128
    %219 = vxpose.xlu0.b32.cont [6/16] 0, 128
    %220 = vxpose.xlu0.b32.cont [7/16] 0, 128
    %221 = vxpose.xlu0.b32.cont [8/16] 0, 128
    %222 = vxpose.xlu0.b32.cont [9/16] 0, 128
    %223 = vxpose.xlu0.b32.cont [10/16] 0, 128
    %224 = vxpose.xlu0.b32.cont [11/16] 0, 128
    %225 = vxpose.xlu0.b32.cont [12/16] 0, 128
    %226 = vxpose.xlu0.b32.cont [13/16] 0, 128
    %227 = vxpose.xlu0.b32.cont [14/16] 0, 128
    %228 = vxpose.xlu0.b32.cont [15/16] 0, 128
    %229 = vxpose.xlu0.b32.end [16/16] 0, 128
    %v230 = vpop.trf.xlu0
    %v231 = vpop.trf.xlu0
    %v232 = vpop.trf.xlu0
    %v233 = vpop.trf.xlu0
    %v234 = vpop.trf.xlu0
    %v235 = vpop.trf.xlu0
    %v236 = vpop.trf.xlu0
    %v237 = vpop.trf.xlu0
    %v238 = vpop.trf.xlu0
    %v239 = vpop.trf.xlu0
    %v240 = vpop.trf.xlu0
    %v241 = vpop.trf.xlu0
    %v242 = vpop.trf.xlu0
    %v243 = vpop.trf.xlu0
    %v244 = vpop.trf.xlu0
    %v245 = vpop.trf.xlu0
    %vm246 = vcmask 123904
    %247 = vst.msk [vmem:[#allocation2] sm:$0x3] %vm246, %v230
    %248 = vxpose.xlu0.b32.start [1/16] %v211, 128
    %249 = vxpose.xlu0.b32.cont [2/16] %v213, 128
    %250 = vxpose.xlu0.b32.cont [3/16] 0.0, 128
    %251 = vxpose.xlu0.b32.cont [4/16] 0.0, 128
    %252 = vxpose.xlu0.b32.cont [5/16] 0.0, 128
    %253 = vxpose.xlu0.b32.cont [6/16] 0.0, 128
    %254 = vxpose.xlu0.b32.cont [7/16] 0.0, 128
    %255 = vxpose.xlu0.b32.cont [8/16] 0.0, 128
    %256 = vxpose.xlu0.b32.cont [9/16] 0.0, 128
    %257 = vxpose.xlu0.b32.cont [10/16] 0.0, 128
    %258 = vxpose.xlu0.b32.cont [11/16] 0.0, 128
    %259 = vxpose.xlu0.b32.cont [12/16] 0.0, 128
    %260 = vxpose.xlu0.b32.cont [13/16] 0.0, 128
    %261 = vxpose.xlu0.b32.cont [14/16] 0.0, 128
    %262 = vxpose.xlu0.b32.cont [15/16] 0.0, 128
    %263 = vxpose.xlu0.b32.end [16/16] 0.0, 128
    %v264 = vpop.trf.xlu0
    %v265 = vpop.trf.xlu0
    %v266 = vpop.trf.xlu0
    %v267 = vpop.trf.xlu0
    %v268 = vpop.trf.xlu0
    %v269 = vpop.trf.xlu0
    %v270 = vpop.trf.xlu0
    %v271 = vpop.trf.xlu0
    %v272 = vpop.trf.xlu0
    %v273 = vpop.trf.xlu0
    %v274 = vpop.trf.xlu0
    %v275 = vpop.trf.xlu0
    %v276 = vpop.trf.xlu0
    %v277 = vpop.trf.xlu0
    %v278 = vpop.trf.xlu0
    %v279 = vpop.trf.xlu0
    %280 = vst.msk [vmem:[#allocation4] sm:$0x3] %vm246, %v264
    // Predicated region
    $region10: #{tpu_custom_call.1} parent=1 // pred_check
      _
    $region11: #{tpu_custom_call.1} parent=1 // pred_check_branch
      %282 = sbr.rel (0) target = $region13
    $region12: #{tpu_custom_call.1} parent=1 // pred_region
      %s284 = ssub.s32 32, 32
      %285 = vsyncadd [#allocation3], %s284
      %s287 = sshll.u32 [#allocation2], 4
      %s288 = int_to_ptr.vmem [resolvable:$true] %s287
      %290 = dma.vmem_to_hbm [thread:$0]  %s288, 32, %s2, [#allocation3]
    $region13: #{tpu_custom_call.1} parent=1 // pred_fallthru
      _
    // Predicated region
    $region14: #{tpu_custom_call.1} parent=1 // pred_check
      _
    $region15: #{tpu_custom_call.1} parent=1 // pred_check_branch
      %292 = sbr.rel (0) target = $region17
    $region16: #{tpu_custom_call.1} parent=1 // pred_region
      %s294 = ssub.s32 32, 32
      %295 = vsyncadd [#allocation5], %s294
      %s297 = sshll.u32 [#allocation4], 4
      %s298 = int_to_ptr.vmem [resolvable:$true] %s297
      %300 = dma.vmem_to_hbm [thread:$0]  %s298, 32, %s3, [#allocation5]
    $region17: #{tpu_custom_call.1} parent=1 // pred_fallthru
      _
    // Predicated region
    $region18: #{tpu_custom_call.1} parent=1 // pred_check
      _
    $region19: #{tpu_custom_call.1} parent=1 // pred_check_branch
      %302 = sbr.rel (0) target = $region21
    $region20: #{tpu_custom_call.1} parent=1 // pred_region
      %303 = dma.done [#allocation3], 32
    $region21: #{tpu_custom_call.1} parent=1 // pred_fallthru
      _
    // Predicated region
    $region22: #{tpu_custom_call.1} parent=1 // pred_check
      _
    $region23: #{tpu_custom_call.1} parent=1 // pred_check_branch
      %305 = sbr.rel (0) target = $region25
    $region24: #{tpu_custom_call.1} parent=1 // pred_region
      %306 = dma.done [#allocation5], 32
    $region25: #{tpu_custom_call.1} parent=1 // pred_fallthru
      _
    %307 = vsyncpa [#allocation3], 1
    %308 = vsyncpa [#allocation5], 1

</llo_original>
